<compile_context>
chip_gen: v7x
topology: tpu7x:2x2x1
jax: 0.10.0
libtpu: 0.0.40
codegen_flags: <defaults>
</compile_context>

<pallas_src>
import functools

import jax
import jax.numpy as jnp
from jax import lax
from jax.experimental import pallas as pl
from jax.experimental.pallas import tpu as pltpu

_LANE = 128


def _emit_chunk(x_ref, o_ref, cols, *, C, D, P):
    """Compute all factor rows for one lane chunk.

    x_ref: (C, D, TM) VMEM block (channel, day-in-window, row=batch*window).
    o_ref: (F, TM) VMEM block with F = 2*P + 6*C.
    cols:  lane selection (python slice or pl.ds with an aligned start).
    """
    f32 = jnp.float32
    inv_d = 1.0 / D
    inv_dm1 = 1.0 / (D - 1)
    # linearly increasing decay weights (most recent day heaviest), sum to 1.
    w = [2.0 * (d + 1) / (D * (D + 1)) for d in range(D)]

    first = x_ref[:, 0, cols].astype(f32)          # (C, L)
    last = x_ref[:, D - 1, cols].astype(f32)       # (C, L)

    s = first                                      # running sum over days
    dec = first * w[0]                             # decay-weighted sum
    szz = jnp.zeros_like(first)                    # sum of squared shifted values
    zs = []                                        # z_d = y_d - y_0 for d >= 1
    for d in range(1, D):
        y_d = x_ref[:, d, cols].astype(f32)        # strided (C, L) slice load
        s = s + y_d
        dec = dec + w[d] * y_d
        z_d = y_d - first
        szz = szz + z_d * z_d
        zs.append(z_d)

    m = s * inv_d                                  # window mean
    mz = m - first                                 # mean of shifted values
    # shift-invariant sample variance (ddof=1), well conditioned for price-like
    # data because z is O(window range), not O(price level).
    var = (szz - D * mz * mz) * inv_dm1
    inv_std = lax.rsqrt(var)                       # hoisted, reused below

    base = 2 * P                                   # rows: corr | cov | branches
    o_ref[base + 0 * C:base + 1 * C, cols] = var * inv_std      # ts_stddev
    o_ref[base + 1 * C:base + 2 * C, cols] = m * inv_std        # ts_zscore
    o_ref[base + 2 * C:base + 3 * C, cols] = (
        last * pl.reciprocal(first, approx=True) - 1.0)         # ts_return
    o_ref[base + 3 * C:base + 4 * C, cols] = dec                # ts_decaylinear
    o_ref[base + 4 * C:base + 5 * C, cols] = m                  # ts_mean
    o_ref[base + 5 * C:base + 6 * C, cols] = last               # ts_identity

    # Pairwise cov / corr: for anchor channel i, covariances against *all*
    # channels form a dense (C, L) block; rows j > i are exactly the contiguous
    # output rows for pairs (i, i+1), ..., (i, C-1), so stores stay dense.
    row = 0
    for i in range(C - 1):
        si = zs[0] * zs[0][i:i + 1, :]
        for z_d in zs[1:]:
            si = si + z_d * z_d[i:i + 1, :]
        cov_i = (si - D * mz * mz[i:i + 1, :]) * inv_dm1        # (C, L)
        corr_i = cov_i * (inv_std * inv_std[i:i + 1, :])        # (C, L)
        n = C - 1 - i
        o_ref[row:row + n, cols] = corr_i[i + 1:, :]            # ts_corr rows
        o_ref[P + row:P + row + n, cols] = cov_i[i + 1:, :]     # ts_cov rows
        row += n


def _factor_kernel(x_ref, o_ref, *, C, D, P, TL, n_chunks):
    if n_chunks <= 1:
        _emit_chunk(x_ref, o_ref, slice(None), C=C, D=D, P=P)
    else:
        def body(t, carry):
            col0 = pl.multiple_of(t * TL, TL)
            _emit_chunk(x_ref, o_ref, pl.ds(col0, TL), C=C, D=D, P=P)
            return carry

        lax.fori_loop(0, n_chunks, body, 0)


def _choose_tiles(NW, C, D, row_tile):
    """Pick (TM, TL, grid): TM = grid block lanes, TL = inner compute chunk."""
    if NW < 2 * _LANE:
        return NW, NW, 1                           # single full-dim block
    cap = max(_LANE, (row_tile // _LANE) * _LANE)
    # cap TM so the grid has >= 2 steps -> megacore sharding on v7x.
    tm = max(_LANE, min(cap, ((NW // 2) // _LANE) * _LANE))
    grid = -(-NW // tm)
    # inner lane chunk: keep per-chunk live f32 well inside the 256 KiB vregs.
    budget = 220 * 1024
    tl = _LANE
    for cand in (1024, 512, 256, 128):
        if cand <= tm and tm % cand == 0 and (D + 9) * C * cand * 4 <= budget:
            tl = cand
            break
    return tm, tl, grid


def factor_extraction(x, *, days=10, stride=10, row_tile=8192):
    """x: (N, C, T) NCT layout. Returns (N, n_windows, F), F = C*(C-1) + 6*C."""
    if days < 2:
        raise ValueError("days must be >= 2; window statistics are degenerate.")
    N, C, T = x.shape
    D = days
    W = (T - D) // stride + 1
    P = C * (C - 1) // 2
    F = 2 * P + 6 * C
    NW = N * W

    # Rolling-window extraction; with stride == days (module default) this is a
    # pure reshape -- no extra HBM copy of the windows.
    if stride == days:
        xw = x[:, :, :W * D].reshape(N, C, W, D)
    else:
        # TODO(synk): general stride falls back to explicit window slices.
        xw = jnp.stack(
            [x[:, :, w * stride:w * stride + D] for w in range(W)], axis=2)

    # (N, C, W, D) -> (C, D, N*W): batch*window lands on the 128-lane axis so
    # all reductions over D are full-vreg work and output stores are lane dense.
    # Input dtype is preserved (no host upcast); the kernel upcasts on load.
    xt = jnp.transpose(xw, (1, 3, 0, 2)).reshape(C, D, NW)

    TM, TL, grid = _choose_tiles(NW, C, D, row_tile)
    n_chunks = max(1, TM // TL)

    in_bytes = C * D * TM * xt.dtype.itemsize
    out_bytes = F * TM * 4
    vmem_limit = int(min(112 * 2**20, max(32 * 2**20, 3 * (in_bytes + out_bytes))))

    kernel = functools.partial(
        _factor_kernel, C=C, D=D, P=P, TL=TL, n_chunks=n_chunks)
    out = pl.pallas_call(
        kernel,
        out_shape=jax.ShapeDtypeStruct((F, NW), jnp.float32),
        grid=(grid,),
        in_specs=[pl.BlockSpec((C, D, TM), lambda i: (0, 0, i))],
        out_specs=pl.BlockSpec((F, TM), lambda i: (0, i)),
        compiler_params=pltpu.CompilerParams(
            dimension_semantics=("parallel",),
            vmem_limit_bytes=vmem_limit),
    )(xt)

    # TS_Batchnorm1d: training-mode batch stats (gamma=1, beta=0, eps=1e-5) per
    # feature column over batch*windows; the per-branch BN of forward() equals a
    # per-column BN of the concatenated matrix.  Fuses with the final transpose
    # under jit.
    mu = jnp.mean(out, axis=1, keepdims=True)
    var = jnp.mean(jnp.square(out - mu), axis=1, keepdims=True)
    feats = (out - mu) * lax.rsqrt(var + 1e-5)
    return feats.T.reshape(N, W, F)


def _reference(x, days, stride):
    """Plain-JAX reference of the same forward semantics."""
    x = x.astype(jnp.float32)
    N, C, T = x.shape
    D = days
    W = (T - D) // stride + 1
    idx = (jnp.arange(W) * stride)[:, None] + jnp.arange(D)[None, :]
    y = x[:, :, idx]                                   # (N, C, W, D)
    m = y.mean(-1)                                     # (N, C, W)
    yc = y - m[..., None]
    var = (yc * yc).sum(-1) / (D - 1)
    std = jnp.sqrt(var)
    zscore = m / std
    ret = y[..., -1] / y[..., 0] - 1.0
    dw = jnp.arange(1, D + 1, dtype=jnp.float32) * (2.0 / (D * (D + 1)))
    dec = (y * dw).sum(-1)
    ident = y[..., -1]
    covs, corrs = [], []
    for i in range(C):
        for j in range(i + 1, C):
            cv = (yc[:, i] * yc[:, j]).sum(-1) / (D - 1)
            covs.append(cv)
            corrs.append(cv / (std[:, i] * std[:, j]))
    per_pair = ([jnp.stack(corrs, axis=-1), jnp.stack(covs, axis=-1)]
                if covs else [])
    per_chan = [jnp.transpose(a, (0, 2, 1))
                for a in (std, zscore, ret, dec, m, ident)]
    feats = jnp.concatenate(per_pair + per_chan, axis=-1)   # (N, W, F)
    f2 = feats.reshape(N * W, -1)
    mu = f2.mean(0)
    v = ((f2 - mu) ** 2).mean(0)
    f2 = (f2 - mu) / jnp.sqrt(v + 1e-5)
    return f2.reshape(N, W, -1)


if __name__ == "__main__":
    days, stride = 10, 10
    fn = jax.jit(functools.partial(factor_extraction, days=days, stride=stride))

    # small default shape, a multi-grid-step shape (inner fori chunking), and a
    # shape whose last grid block is partial.
    for (N, C, T) in [(2, 4, 30), (512, 4, 30), (100, 4, 30)]:
        key = jax.random.PRNGKey(0)
        # positive "price-like" inputs so ts_return / corr are well conditioned
        x = jax.random.uniform(key, (N, C, T), jnp.float32,
                               minval=0.5, maxval=1.5)
        out = jax.block_until_ready(fn(x))

        P = C * (C - 1) // 2
        W = (T - days) // stride + 1
        F = 2 * P + 6 * C
        assert out.shape == (N, W, F), out.shape
        assert bool(jnp.all(jnp.isfinite(out)))

        ref = _reference(x, days, stride)
        err = float(jnp.max(jnp.abs(out - ref)))
        assert err < 5e-2, f"max abs err vs reference: {err}"

    print("KERNEL_OK")
</pallas_src>

<mosaic_0001>
module attributes {stable_mosaic.version = 11 : i64} {
  func.func @_factor_kernel(%arg0: i32, %arg1: memref<4x10x6xf32, #tpu.memory_space<vmem>>, %arg2: memref<36x6xf32, #tpu.memory_space<vmem>>) attributes {dimension_semantics = [#tpu.dimension_semantics<parallel>], iteration_bounds = array<i64: 1>, scalar_prefetch = 0 : i64, scratch_operands = 0 : i64, tpu.core_type = #tpu.core_type<tc>, window_params = [{transform_indices = @transform_0, window_bounds = array<i64: 4, 10, 6>}, {transform_indices = @transform_1, window_bounds = array<i64: 36, 6>}]} {
    %c0 = arith.constant 0 : index
    %c0_0 = arith.constant 0 : index
    %c0_1 = arith.constant 0 : index
    %0 = vector.load %arg1[%c0, %c0_0, %c0_1] : memref<4x10x6xf32, #tpu.memory_space<vmem>>, vector<4x1x6xf32>
    %1 = vector.shape_cast %0 : vector<4x1x6xf32> to vector<4x6xf32>
    %c0_2 = arith.constant 0 : index
    %c9 = arith.constant 9 : index
    %c0_3 = arith.constant 0 : index
    %2 = vector.load %arg1[%c0_2, %c9, %c0_3] : memref<4x10x6xf32, #tpu.memory_space<vmem>>, vector<4x1x6xf32>
    %3 = vector.shape_cast %2 : vector<4x1x6xf32> to vector<4x6xf32>
    %cst = arith.constant 0.0181818176 : f32
    %4 = vector.broadcast %cst : f32 to vector<4x6xf32>
    %5 = arith.mulf %1, %4 : vector<4x6xf32>
    %cst_4 = arith.constant 0.000000e+00 : f32
    %6 = vector.broadcast %cst_4 : f32 to vector<4x6xf32>
    %c0_5 = arith.constant 0 : index
    %c1 = arith.constant 1 : index
    %c0_6 = arith.constant 0 : index
    %7 = vector.load %arg1[%c0_5, %c1, %c0_6] : memref<4x10x6xf32, #tpu.memory_space<vmem>>, vector<4x1x6xf32>
    %8 = vector.shape_cast %7 : vector<4x1x6xf32> to vector<4x6xf32>
    %9 = arith.addf %1, %8 : vector<4x6xf32>
    %cst_7 = arith.constant 0.0363636352 : f32
    %10 = vector.broadcast %cst_7 : f32 to vector<4x6xf32>
    %11 = arith.mulf %10, %8 : vector<4x6xf32>
    %12 = arith.addf %5, %11 : vector<4x6xf32>
    %13 = arith.subf %8, %1 : vector<4x6xf32>
    %14 = arith.mulf %13, %13 : vector<4x6xf32>
    %15 = arith.addf %6, %14 : vector<4x6xf32>
    %c0_8 = arith.constant 0 : index
    %c2 = arith.constant 2 : index
    %c0_9 = arith.constant 0 : index
    %16 = vector.load %arg1[%c0_8, %c2, %c0_9] : memref<4x10x6xf32, #tpu.memory_space<vmem>>, vector<4x1x6xf32>
    %17 = vector.shape_cast %16 : vector<4x1x6xf32> to vector<4x6xf32>
    %18 = arith.addf %9, %17 : vector<4x6xf32>
    %cst_10 = arith.constant 0.0545454547 : f32
    %19 = vector.broadcast %cst_10 : f32 to vector<4x6xf32>
    %20 = arith.mulf %19, %17 : vector<4x6xf32>
    %21 = arith.addf %12, %20 : vector<4x6xf32>
    %22 = arith.subf %17, %1 : vector<4x6xf32>
    %23 = arith.mulf %22, %22 : vector<4x6xf32>
    %24 = arith.addf %15, %23 : vector<4x6xf32>
    %c0_11 = arith.constant 0 : index
    %c3 = arith.constant 3 : index
    %c0_12 = arith.constant 0 : index
    %25 = vector.load %arg1[%c0_11, %c3, %c0_12] : memref<4x10x6xf32, #tpu.memory_space<vmem>>, vector<4x1x6xf32>
    %26 = vector.shape_cast %25 : vector<4x1x6xf32> to vector<4x6xf32>
    %27 = arith.addf %18, %26 : vector<4x6xf32>
    %cst_13 = arith.constant 0.0727272704 : f32
    %28 = vector.broadcast %cst_13 : f32 to vector<4x6xf32>
    %29 = arith.mulf %28, %26 : vector<4x6xf32>
    %30 = arith.addf %21, %29 : vector<4x6xf32>
    %31 = arith.subf %26, %1 : vector<4x6xf32>
    %32 = arith.mulf %31, %31 : vector<4x6xf32>
    %33 = arith.addf %24, %32 : vector<4x6xf32>
    %c0_14 = arith.constant 0 : index
    %c4 = arith.constant 4 : index
    %c0_15 = arith.constant 0 : index
    %34 = vector.load %arg1[%c0_14, %c4, %c0_15] : memref<4x10x6xf32, #tpu.memory_space<vmem>>, vector<4x1x6xf32>
    %35 = vector.shape_cast %34 : vector<4x1x6xf32> to vector<4x6xf32>
    %36 = arith.addf %27, %35 : vector<4x6xf32>
    %cst_16 = arith.constant 0.0909090936 : f32
    %37 = vector.broadcast %cst_16 : f32 to vector<4x6xf32>
    %38 = arith.mulf %37, %35 : vector<4x6xf32>
    %39 = arith.addf %30, %38 : vector<4x6xf32>
    %40 = arith.subf %35, %1 : vector<4x6xf32>
    %41 = arith.mulf %40, %40 : vector<4x6xf32>
    %42 = arith.addf %33, %41 : vector<4x6xf32>
    %c0_17 = arith.constant 0 : index
    %c5 = arith.constant 5 : index
    %c0_18 = arith.constant 0 : index
    %43 = vector.load %arg1[%c0_17, %c5, %c0_18] : memref<4x10x6xf32, #tpu.memory_space<vmem>>, vector<4x1x6xf32>
    %44 = vector.shape_cast %43 : vector<4x1x6xf32> to vector<4x6xf32>
    %45 = arith.addf %36, %44 : vector<4x6xf32>
    %cst_19 = arith.constant 0.109090909 : f32
    %46 = vector.broadcast %cst_19 : f32 to vector<4x6xf32>
    %47 = arith.mulf %46, %44 : vector<4x6xf32>
    %48 = arith.addf %39, %47 : vector<4x6xf32>
    %49 = arith.subf %44, %1 : vector<4x6xf32>
    %50 = arith.mulf %49, %49 : vector<4x6xf32>
    %51 = arith.addf %42, %50 : vector<4x6xf32>
    %c0_20 = arith.constant 0 : index
    %c6 = arith.constant 6 : index
    %c0_21 = arith.constant 0 : index
    %52 = vector.load %arg1[%c0_20, %c6, %c0_21] : memref<4x10x6xf32, #tpu.memory_space<vmem>>, vector<4x1x6xf32>
    %53 = vector.shape_cast %52 : vector<4x1x6xf32> to vector<4x6xf32>
    %54 = arith.addf %45, %53 : vector<4x6xf32>
    %cst_22 = arith.constant 0.127272725 : f32
    %55 = vector.broadcast %cst_22 : f32 to vector<4x6xf32>
    %56 = arith.mulf %55, %53 : vector<4x6xf32>
    %57 = arith.addf %48, %56 : vector<4x6xf32>
    %58 = arith.subf %53, %1 : vector<4x6xf32>
    %59 = arith.mulf %58, %58 : vector<4x6xf32>
    %60 = arith.addf %51, %59 : vector<4x6xf32>
    %c0_23 = arith.constant 0 : index
    %c7 = arith.constant 7 : index
    %c0_24 = arith.constant 0 : index
    %61 = vector.load %arg1[%c0_23, %c7, %c0_24] : memref<4x10x6xf32, #tpu.memory_space<vmem>>, vector<4x1x6xf32>
    %62 = vector.shape_cast %61 : vector<4x1x6xf32> to vector<4x6xf32>
    %63 = arith.addf %54, %62 : vector<4x6xf32>
    %cst_25 = arith.constant 0.145454541 : f32
    %64 = vector.broadcast %cst_25 : f32 to vector<4x6xf32>
    %65 = arith.mulf %64, %62 : vector<4x6xf32>
    %66 = arith.addf %57, %65 : vector<4x6xf32>
    %67 = arith.subf %62, %1 : vector<4x6xf32>
    %68 = arith.mulf %67, %67 : vector<4x6xf32>
    %69 = arith.addf %60, %68 : vector<4x6xf32>
    %c0_26 = arith.constant 0 : index
    %c8 = arith.constant 8 : index
    %c0_27 = arith.constant 0 : index
    %70 = vector.load %arg1[%c0_26, %c8, %c0_27] : memref<4x10x6xf32, #tpu.memory_space<vmem>>, vector<4x1x6xf32>
    %71 = vector.shape_cast %70 : vector<4x1x6xf32> to vector<4x6xf32>
    %72 = arith.addf %63, %71 : vector<4x6xf32>
    %cst_28 = arith.constant 0.163636357 : f32
    %73 = vector.broadcast %cst_28 : f32 to vector<4x6xf32>
    %74 = arith.mulf %73, %71 : vector<4x6xf32>
    %75 = arith.addf %66, %74 : vector<4x6xf32>
    %76 = arith.subf %71, %1 : vector<4x6xf32>
    %77 = arith.mulf %76, %76 : vector<4x6xf32>
    %78 = arith.addf %69, %77 : vector<4x6xf32>
    %c0_29 = arith.constant 0 : index
    %c9_30 = arith.constant 9 : index
    %c0_31 = arith.constant 0 : index
    %79 = vector.load %arg1[%c0_29, %c9_30, %c0_31] : memref<4x10x6xf32, #tpu.memory_space<vmem>>, vector<4x1x6xf32>
    %80 = vector.shape_cast %79 : vector<4x1x6xf32> to vector<4x6xf32>
    %81 = arith.addf %72, %80 : vector<4x6xf32>
    %cst_32 = arith.constant 0.181818187 : f32
    %82 = vector.broadcast %cst_32 : f32 to vector<4x6xf32>
    %83 = arith.mulf %82, %80 : vector<4x6xf32>
    %84 = arith.addf %75, %83 : vector<4x6xf32>
    %85 = arith.subf %80, %1 : vector<4x6xf32>
    %86 = arith.mulf %85, %85 : vector<4x6xf32>
    %87 = arith.addf %78, %86 : vector<4x6xf32>
    %cst_33 = arith.constant 1.000000e-01 : f32
    %88 = vector.broadcast %cst_33 : f32 to vector<4x6xf32>
    %89 = arith.mulf %81, %88 : vector<4x6xf32>
    %90 = arith.subf %89, %1 : vector<4x6xf32>
    %cst_34 = arith.constant 1.000000e+01 : f32
    %91 = vector.broadcast %cst_34 : f32 to vector<4x6xf32>
    %92 = arith.mulf %91, %90 : vector<4x6xf32>
    %93 = arith.mulf %92, %90 : vector<4x6xf32>
    %94 = arith.subf %87, %93 : vector<4x6xf32>
    %cst_35 = arith.constant 0.111111112 : f32
    %95 = vector.broadcast %cst_35 : f32 to vector<4x6xf32>
    %96 = arith.mulf %94, %95 : vector<4x6xf32>
    %97 = math.rsqrt %96 : vector<4x6xf32>
    %98 = arith.mulf %96, %97 : vector<4x6xf32>
    %c12 = arith.constant 12 : index
    %c0_36 = arith.constant 0 : index
    %99 = vector.load %arg2[%c12, %c0_36] : memref<36x6xf32, #tpu.memory_space<vmem>>, vector<4x6xf32>
    tpu.vector_store %arg2[%c12, %c0_36], %98 {strides = array<i32>} : memref<36x6xf32, #tpu.memory_space<vmem>>, vector<4x6xf32>,
    %100 = arith.mulf %89, %97 : vector<4x6xf32>
    %c16 = arith.constant 16 : index
    %c0_37 = arith.constant 0 : index
    %101 = vector.load %arg2[%c16, %c0_37] : memref<36x6xf32, #tpu.memory_space<vmem>>, vector<4x6xf32>
    tpu.vector_store %arg2[%c16, %c0_37], %100 {strides = array<i32>} : memref<36x6xf32, #tpu.memory_space<vmem>>, vector<4x6xf32>,
    %102 = tpu.reciprocal %1 {approx = true} : vector<4x6xf32> -> vector<4x6xf32>
    %103 = arith.mulf %3, %102 : vector<4x6xf32>
    %cst_38 = arith.constant 1.000000e+00 : f32
    %104 = vector.broadcast %cst_38 : f32 to vector<4x6xf32>
    %105 = arith.subf %103, %104 : vector<4x6xf32>
    %c20 = arith.constant 20 : index
    %c0_39 = arith.constant 0 : index
    %106 = vector.load %arg2[%c20, %c0_39] : memref<36x6xf32, #tpu.memory_space<vmem>>, vector<4x6xf32>
    tpu.vector_store %arg2[%c20, %c0_39], %105 {strides = array<i32>} : memref<36x6xf32, #tpu.memory_space<vmem>>, vector<4x6xf32>,
    %c24 = arith.constant 24 : index
    %c0_40 = arith.constant 0 : index
    %107 = vector.load %arg2[%c24, %c0_40] : memref<36x6xf32, #tpu.memory_space<vmem>>, vector<4x6xf32>
    tpu.vector_store %arg2[%c24, %c0_40], %84 {strides = array<i32>} : memref<36x6xf32, #tpu.memory_space<vmem>>, vector<4x6xf32>,
    %c28 = arith.constant 28 : index
    %c0_41 = arith.constant 0 : index
    %108 = vector.load %arg2[%c28, %c0_41] : memref<36x6xf32, #tpu.memory_space<vmem>>, vector<4x6xf32>
    tpu.vector_store %arg2[%c28, %c0_41], %89 {strides = array<i32>} : memref<36x6xf32, #tpu.memory_space<vmem>>, vector<4x6xf32>,
    %c32 = arith.constant 32 : index
    %c0_42 = arith.constant 0 : index
    %109 = vector.load %arg2[%c32, %c0_42] : memref<36x6xf32, #tpu.memory_space<vmem>>, vector<4x6xf32>
    tpu.vector_store %arg2[%c32, %c0_42], %3 {strides = array<i32>} : memref<36x6xf32, #tpu.memory_space<vmem>>, vector<4x6xf32>,
    %110 = vector.extract_strided_slice %13 {offsets = [0, 0], sizes = [1, 6], strides = [1, 1]} : vector<4x6xf32> to vector<1x6xf32>
    %111 = vector.broadcast %110 : vector<1x6xf32> to vector<4x6xf32>
    %112 = arith.mulf %13, %111 : vector<4x6xf32>
    %113 = vector.extract_strided_slice %22 {offsets = [0, 0], sizes = [1, 6], strides = [1, 1]} : vector<4x6xf32> to vector<1x6xf32>
    %114 = vector.broadcast %113 : vector<1x6xf32> to vector<4x6xf32>
    %115 = arith.mulf %22, %114 : vector<4x6xf32>
    %116 = arith.addf %112, %115 : vector<4x6xf32>
    %117 = vector.extract_strided_slice %31 {offsets = [0, 0], sizes = [1, 6], strides = [1, 1]} : vector<4x6xf32> to vector<1x6xf32>
    %118 = vector.broadcast %117 : vector<1x6xf32> to vector<4x6xf32>
    %119 = arith.mulf %31, %118 : vector<4x6xf32>
    %120 = arith.addf %116, %119 : vector<4x6xf32>
    %121 = vector.extract_strided_slice %40 {offsets = [0, 0], sizes = [1, 6], strides = [1, 1]} : vector<4x6xf32> to vector<1x6xf32>
    %122 = vector.broadcast %121 : vector<1x6xf32> to vector<4x6xf32>
    %123 = arith.mulf %40, %122 : vector<4x6xf32>
    %124 = arith.addf %120, %123 : vector<4x6xf32>
    %125 = vector.extract_strided_slice %49 {offsets = [0, 0], sizes = [1, 6], strides = [1, 1]} : vector<4x6xf32> to vector<1x6xf32>
    %126 = vector.broadcast %125 : vector<1x6xf32> to vector<4x6xf32>
    %127 = arith.mulf %49, %126 : vector<4x6xf32>
    %128 = arith.addf %124, %127 : vector<4x6xf32>
    %129 = vector.extract_strided_slice %58 {offsets = [0, 0], sizes = [1, 6], strides = [1, 1]} : vector<4x6xf32> to vector<1x6xf32>
    %130 = vector.broadcast %129 : vector<1x6xf32> to vector<4x6xf32>
    %131 = arith.mulf %58, %130 : vector<4x6xf32>
    %132 = arith.addf %128, %131 : vector<4x6xf32>
    %133 = vector.extract_strided_slice %67 {offsets = [0, 0], sizes = [1, 6], strides = [1, 1]} : vector<4x6xf32> to vector<1x6xf32>
    %134 = vector.broadcast %133 : vector<1x6xf32> to vector<4x6xf32>
    %135 = arith.mulf %67, %134 : vector<4x6xf32>
    %136 = arith.addf %132, %135 : vector<4x6xf32>
    %137 = vector.extract_strided_slice %76 {offsets = [0, 0], sizes = [1, 6], strides = [1, 1]} : vector<4x6xf32> to vector<1x6xf32>
    %138 = vector.broadcast %137 : vector<1x6xf32> to vector<4x6xf32>
    %139 = arith.mulf %76, %138 : vector<4x6xf32>
    %140 = arith.addf %136, %139 : vector<4x6xf32>
    %141 = vector.extract_strided_slice %85 {offsets = [0, 0], sizes = [1, 6], strides = [1, 1]} : vector<4x6xf32> to vector<1x6xf32>
    %142 = vector.broadcast %141 : vector<1x6xf32> to vector<4x6xf32>
    %143 = arith.mulf %85, %142 : vector<4x6xf32>
    %144 = arith.addf %140, %143 : vector<4x6xf32>
    %cst_43 = arith.constant 1.000000e+01 : f32
    %145 = vector.broadcast %cst_43 : f32 to vector<4x6xf32>
    %146 = arith.mulf %145, %90 : vector<4x6xf32>
    %147 = vector.extract_strided_slice %90 {offsets = [0, 0], sizes = [1, 6], strides = [1, 1]} : vector<4x6xf32> to vector<1x6xf32>
    %148 = vector.broadcast %147 : vector<1x6xf32> to vector<4x6xf32>
    %149 = arith.mulf %146, %148 : vector<4x6xf32>
    %150 = arith.subf %144, %149 : vector<4x6xf32>
    %cst_44 = arith.constant 0.111111112 : f32
    %151 = vector.broadcast %cst_44 : f32 to vector<4x6xf32>
    %152 = arith.mulf %150, %151 : vector<4x6xf32>
    %153 = vector.extract_strided_slice %97 {offsets = [0, 0], sizes = [1, 6], strides = [1, 1]} : vector<4x6xf32> to vector<1x6xf32>
    %154 = vector.broadcast %153 : vector<1x6xf32> to vector<4x6xf32>
    %155 = arith.mulf %97, %154 : vector<4x6xf32>
    %156 = arith.mulf %152, %155 : vector<4x6xf32>
    %157 = vector.extract_strided_slice %156 {offsets = [1, 0], sizes = [3, 6], strides = [1, 1]} : vector<4x6xf32> to vector<3x6xf32>
    %c0_45 = arith.constant 0 : index
    %c0_46 = arith.constant 0 : index
    %158 = vector.load %arg2[%c0_45, %c0_46] : memref<36x6xf32, #tpu.memory_space<vmem>>, vector<3x6xf32>
    tpu.vector_store %arg2[%c0_45, %c0_46], %157 {strides = array<i32>} : memref<36x6xf32, #tpu.memory_space<vmem>>, vector<3x6xf32>,
    %159 = vector.extract_strided_slice %152 {offsets = [1, 0], sizes = [3, 6], strides = [1, 1]} : vector<4x6xf32> to vector<3x6xf32>
    %c6_47 = arith.constant 6 : index
    %c0_48 = arith.constant 0 : index
    %160 = vector.load %arg2[%c6_47, %c0_48] : memref<36x6xf32, #tpu.memory_space<vmem>>, vector<3x6xf32>
    tpu.vector_store %arg2[%c6_47, %c0_48], %159 {strides = array<i32>} : memref<36x6xf32, #tpu.memory_space<vmem>>, vector<3x6xf32>,
    %161 = vector.extract_strided_slice %13 {offsets = [1, 0], sizes = [1, 6], strides = [1, 1]} : vector<4x6xf32> to vector<1x6xf32>
    %162 = vector.broadcast %161 : vector<1x6xf32> to vector<4x6xf32>
    %163 = arith.mulf %13, %162 : vector<4x6xf32>
    %164 = vector.extract_strided_slice %22 {offsets = [1, 0], sizes = [1, 6], strides = [1, 1]} : vector<4x6xf32> to vector<1x6xf32>
    %165 = vector.broadcast %164 : vector<1x6xf32> to vector<4x6xf32>
    %166 = arith.mulf %22, %165 : vector<4x6xf32>
    %167 = arith.addf %163, %166 : vector<4x6xf32>
    %168 = vector.extract_strided_slice %31 {offsets = [1, 0], sizes = [1, 6], strides = [1, 1]} : vector<4x6xf32> to vector<1x6xf32>
    %169 = vector.broadcast %168 : vector<1x6xf32> to vector<4x6xf32>
    %170 = arith.mulf %31, %169 : vector<4x6xf32>
    %171 = arith.addf %167, %170 : vector<4x6xf32>
    %172 = vector.extract_strided_slice %40 {offsets = [1, 0], sizes = [1, 6], strides = [1, 1]} : vector<4x6xf32> to vector<1x6xf32>
    %173 = vector.broadcast %172 : vector<1x6xf32> to vector<4x6xf32>
    %174 = arith.mulf %40, %173 : vector<4x6xf32>
    %175 = arith.addf %171, %174 : vector<4x6xf32>
    %176 = vector.extract_strided_slice %49 {offsets = [1, 0], sizes = [1, 6], strides = [1, 1]} : vector<4x6xf32> to vector<1x6xf32>
    %177 = vector.broadcast %176 : vector<1x6xf32> to vector<4x6xf32>
    %178 = arith.mulf %49, %177 : vector<4x6xf32>
    %179 = arith.addf %175, %178 : vector<4x6xf32>
    %180 = vector.extract_strided_slice %58 {offsets = [1, 0], sizes = [1, 6], strides = [1, 1]} : vector<4x6xf32> to vector<1x6xf32>
    %181 = vector.broadcast %180 : vector<1x6xf32> to vector<4x6xf32>
    %182 = arith.mulf %58, %181 : vector<4x6xf32>
    %183 = arith.addf %179, %182 : vector<4x6xf32>
    %184 = vector.extract_strided_slice %67 {offsets = [1, 0], sizes = [1, 6], strides = [1, 1]} : vector<4x6xf32> to vector<1x6xf32>
    %185 = vector.broadcast %184 : vector<1x6xf32> to vector<4x6xf32>
    %186 = arith.mulf %67, %185 : vector<4x6xf32>
    %187 = arith.addf %183, %186 : vector<4x6xf32>
    %188 = vector.extract_strided_slice %76 {offsets = [1, 0], sizes = [1, 6], strides = [1, 1]} : vector<4x6xf32> to vector<1x6xf32>
    %189 = vector.broadcast %188 : vector<1x6xf32> to vector<4x6xf32>
    %190 = arith.mulf %76, %189 : vector<4x6xf32>
    %191 = arith.addf %187, %190 : vector<4x6xf32>
    %192 = vector.extract_strided_slice %85 {offsets = [1, 0], sizes = [1, 6], strides = [1, 1]} : vector<4x6xf32> to vector<1x6xf32>
    %193 = vector.broadcast %192 : vector<1x6xf32> to vector<4x6xf32>
    %194 = arith.mulf %85, %193 : vector<4x6xf32>
    %195 = arith.addf %191, %194 : vector<4x6xf32>
    %cst_49 = arith.constant 1.000000e+01 : f32
    %196 = vector.broadcast %cst_49 : f32 to vector<4x6xf32>
    %197 = arith.mulf %196, %90 : vector<4x6xf32>
    %198 = vector.extract_strided_slice %90 {offsets = [1, 0], sizes = [1, 6], strides = [1, 1]} : vector<4x6xf32> to vector<1x6xf32>
    %199 = vector.broadcast %198 : vector<1x6xf32> to vector<4x6xf32>
    %200 = arith.mulf %197, %199 : vector<4x6xf32>
    %201 = arith.subf %195, %200 : vector<4x6xf32>
    %cst_50 = arith.constant 0.111111112 : f32
    %202 = vector.broadcast %cst_50 : f32 to vector<4x6xf32>
    %203 = arith.mulf %201, %202 : vector<4x6xf32>
    %204 = vector.extract_strided_slice %97 {offsets = [1, 0], sizes = [1, 6], strides = [1, 1]} : vector<4x6xf32> to vector<1x6xf32>
    %205 = vector.broadcast %204 : vector<1x6xf32> to vector<4x6xf32>
    %206 = arith.mulf %97, %205 : vector<4x6xf32>
    %207 = arith.mulf %203, %206 : vector<4x6xf32>
    %208 = vector.extract_strided_slice %207 {offsets = [2, 0], sizes = [2, 6], strides = [1, 1]} : vector<4x6xf32> to vector<2x6xf32>
    %c3_51 = arith.constant 3 : index
    %c0_52 = arith.constant 0 : index
    %209 = vector.load %arg2[%c3_51, %c0_52] : memref<36x6xf32, #tpu.memory_space<vmem>>, vector<2x6xf32>
    tpu.vector_store %arg2[%c3_51, %c0_52], %208 {strides = array<i32>} : memref<36x6xf32, #tpu.memory_space<vmem>>, vector<2x6xf32>,
    %210 = vector.extract_strided_slice %203 {offsets = [2, 0], sizes = [2, 6], strides = [1, 1]} : vector<4x6xf32> to vector<2x6xf32>
    %c9_53 = arith.constant 9 : index
    %c0_54 = arith.constant 0 : index
    %211 = vector.load %arg2[%c9_53, %c0_54] : memref<36x6xf32, #tpu.memory_space<vmem>>, vector<2x6xf32>
    tpu.vector_store %arg2[%c9_53, %c0_54], %210 {strides = array<i32>} : memref<36x6xf32, #tpu.memory_space<vmem>>, vector<2x6xf32>,
    %212 = vector.extract_strided_slice %13 {offsets = [2, 0], sizes = [1, 6], strides = [1, 1]} : vector<4x6xf32> to vector<1x6xf32>
    %213 = vector.broadcast %212 : vector<1x6xf32> to vector<4x6xf32>
    %214 = arith.mulf %13, %213 : vector<4x6xf32>
    %215 = vector.extract_strided_slice %22 {offsets = [2, 0], sizes = [1, 6], strides = [1, 1]} : vector<4x6xf32> to vector<1x6xf32>
    %216 = vector.broadcast %215 : vector<1x6xf32> to vector<4x6xf32>
    %217 = arith.mulf %22, %216 : vector<4x6xf32>
    %218 = arith.addf %214, %217 : vector<4x6xf32>
    %219 = vector.extract_strided_slice %31 {offsets = [2, 0], sizes = [1, 6], strides = [1, 1]} : vector<4x6xf32> to vector<1x6xf32>
    %220 = vector.broadcast %219 : vector<1x6xf32> to vector<4x6xf32>
    %221 = arith.mulf %31, %220 : vector<4x6xf32>
    %222 = arith.addf %218, %221 : vector<4x6xf32>
    %223 = vector.extract_strided_slice %40 {offsets = [2, 0], sizes = [1, 6], strides = [1, 1]} : vector<4x6xf32> to vector<1x6xf32>
    %224 = vector.broadcast %223 : vector<1x6xf32> to vector<4x6xf32>
    %225 = arith.mulf %40, %224 : vector<4x6xf32>
    %226 = arith.addf %222, %225 : vector<4x6xf32>
    %227 = vector.extract_strided_slice %49 {offsets = [2, 0], sizes = [1, 6], strides = [1, 1]} : vector<4x6xf32> to vector<1x6xf32>
    %228 = vector.broadcast %227 : vector<1x6xf32> to vector<4x6xf32>
    %229 = arith.mulf %49, %228 : vector<4x6xf32>
    %230 = arith.addf %226, %229 : vector<4x6xf32>
    %231 = vector.extract_strided_slice %58 {offsets = [2, 0], sizes = [1, 6], strides = [1, 1]} : vector<4x6xf32> to vector<1x6xf32>
    %232 = vector.broadcast %231 : vector<1x6xf32> to vector<4x6xf32>
    %233 = arith.mulf %58, %232 : vector<4x6xf32>
    %234 = arith.addf %230, %233 : vector<4x6xf32>
    %235 = vector.extract_strided_slice %67 {offsets = [2, 0], sizes = [1, 6], strides = [1, 1]} : vector<4x6xf32> to vector<1x6xf32>
    %236 = vector.broadcast %235 : vector<1x6xf32> to vector<4x6xf32>
    %237 = arith.mulf %67, %236 : vector<4x6xf32>
    %238 = arith.addf %234, %237 : vector<4x6xf32>
    %239 = vector.extract_strided_slice %76 {offsets = [2, 0], sizes = [1, 6], strides = [1, 1]} : vector<4x6xf32> to vector<1x6xf32>
    %240 = vector.broadcast %239 : vector<1x6xf32> to vector<4x6xf32>
    %241 = arith.mulf %76, %240 : vector<4x6xf32>
    %242 = arith.addf %238, %241 : vector<4x6xf32>
    %243 = vector.extract_strided_slice %85 {offsets = [2, 0], sizes = [1, 6], strides = [1, 1]} : vector<4x6xf32> to vector<1x6xf32>
    %244 = vector.broadcast %243 : vector<1x6xf32> to vector<4x6xf32>
    %245 = arith.mulf %85, %244 : vector<4x6xf32>
    %246 = arith.addf %242, %245 : vector<4x6xf32>
    %cst_55 = arith.constant 1.000000e+01 : f32
    %247 = vector.broadcast %cst_55 : f32 to vector<4x6xf32>
    %248 = arith.mulf %247, %90 : vector<4x6xf32>
    %249 = vector.extract_strided_slice %90 {offsets = [2, 0], sizes = [1, 6], strides = [1, 1]} : vector<4x6xf32> to vector<1x6xf32>
    %250 = vector.broadcast %249 : vector<1x6xf32> to vector<4x6xf32>
    %251 = arith.mulf %248, %250 : vector<4x6xf32>
    %252 = arith.subf %246, %251 : vector<4x6xf32>
    %cst_56 = arith.constant 0.111111112 : f32
    %253 = vector.broadcast %cst_56 : f32 to vector<4x6xf32>
    %254 = arith.mulf %252, %253 : vector<4x6xf32>
    %255 = vector.extract_strided_slice %97 {offsets = [2, 0], sizes = [1, 6], strides = [1, 1]} : vector<4x6xf32> to vector<1x6xf32>
    %256 = vector.broadcast %255 : vector<1x6xf32> to vector<4x6xf32>
    %257 = arith.mulf %97, %256 : vector<4x6xf32>
    %258 = arith.mulf %254, %257 : vector<4x6xf32>
    %259 = vector.extract_strided_slice %258 {offsets = [3, 0], sizes = [1, 6], strides = [1, 1]} : vector<4x6xf32> to vector<1x6xf32>
    %c5_57 = arith.constant 5 : index
    %c0_58 = arith.constant 0 : index
    %260 = vector.load %arg2[%c5_57, %c0_58] : memref<36x6xf32, #tpu.memory_space<vmem>>, vector<1x6xf32>
    tpu.vector_store %arg2[%c5_57, %c0_58], %259 {strides = array<i32>} : memref<36x6xf32, #tpu.memory_space<vmem>>, vector<1x6xf32>,
    %261 = vector.extract_strided_slice %254 {offsets = [3, 0], sizes = [1, 6], strides = [1, 1]} : vector<4x6xf32> to vector<1x6xf32>
    %c11 = arith.constant 11 : index
    %c0_59 = arith.constant 0 : index
    %262 = vector.load %arg2[%c11, %c0_59] : memref<36x6xf32, #tpu.memory_space<vmem>>, vector<1x6xf32>
    tpu.vector_store %arg2[%c11, %c0_59], %261 {strides = array<i32>} : memref<36x6xf32, #tpu.memory_space<vmem>>, vector<1x6xf32>,
    return
  }
  func.func @transform_0(%arg0: i32) -> (i32, i32, i32) {
    %c0_i32 = arith.constant 0 : i32
    %c0_i32_0 = arith.constant 0 : i32
    %c0_i32_1 = arith.constant 0 : i32
    return %c0_i32, %c0_i32_0, %arg0 : i32, i32, i32
  }
  func.func @transform_1(%arg0: i32) -> (i32, i32) {
    %c0_i32 = arith.constant 0 : i32
    %c0_i32_0 = arith.constant 0 : i32
    return %c0_i32, %arg0 : i32, i32
  }
}

</mosaic_0001>

<llo_original>
// kernel: factor_extraction.1
$region0: #{factor_extraction.1}
  #allocation0 [shape = 'u32[]', space=smem, size = 0x4, offset = 0x4, fixed_abs, tag = 'smem constant byte address 0x4 - core index']
  #allocation1 [shape = 'u32[144,128]{1,0:T(1,128)}', space=vmem, size = 0x12000, scoped, tag = 'internal scratch']
  %s0 = inlined_call_operand.vmem [shape: f32[4,10,6], index: 0, kind: input, shape index: {}]
  %s1 = inlined_call_operand.vmem [shape: f32[36,6], index: 1, kind: output, shape index: {}]
  %s2 = sld [smem:[#allocation0]]
  $region14: #{factor_extraction.1} parent=0
    _
  %s4 = ssub.s32 1, %s2
  %s5 = scalar_select 0, %s4, %s2
  // Predicated region
  $region2: #{factor_extraction.1} parent=0 // pred_check
    _
  $region3: #{factor_extraction.1} parent=0 // pred_check_branch
    %7 = sbr.rel (0) target = $region5
  $region4: #{factor_extraction.1} parent=0 // pred_region
    _
  $region5: #{factor_extraction.1} parent=0 // pred_fallthru
    _
  %v8 = vld [vmem:[%s0] sm:$0x1]
  %v9 = vld [vmem:[%s0 + $0x10] sm:$0x1]
  %v10 = vld [vmem:[%s0 + $0x20] sm:$0x1]
  %v11 = vld [vmem:[%s0 + $0x30] sm:$0x1]
  %v12 = vld [vmem:[%s0 + $0x9] sm:$0x1]
  %v13 = vld [vmem:[%s0 + $0x19] sm:$0x1]
  %v14 = vld [vmem:[%s0 + $0x29] sm:$0x1]
  %v15 = vld [vmem:[%s0 + $0x39] sm:$0x1]
  %v16 = vmul.f32 %v8, 0.018181818
  %v17 = vmul.f32 %v9, 0.018181818
  %v18 = vmul.f32 %v10, 0.018181818
  %v19 = vmul.f32 %v11, 0.018181818
  %v20 = vld [vmem:[%s0 + $0x1] sm:$0x1]
  %v21 = vld [vmem:[%s0 + $0x11] sm:$0x1]
  %v22 = vld [vmem:[%s0 + $0x21] sm:$0x1]
  %v23 = vld [vmem:[%s0 + $0x31] sm:$0x1]
  %v24 = vadd.f32 %v8, %v20
  %v25 = vadd.f32 %v9, %v21
  %v26 = vadd.f32 %v10, %v22
  %v27 = vadd.f32 %v11, %v23
  %v28 = vmul.f32 %v20, 0.036363635
  %v29 = vmul.f32 %v21, 0.036363635
  %v30 = vmul.f32 %v22, 0.036363635
  %v31 = vmul.f32 %v23, 0.036363635
  %v32 = vadd.f32 %v16, %v28
  %v33 = vadd.f32 %v17, %v29
  %v34 = vadd.f32 %v18, %v30
  %v35 = vadd.f32 %v19, %v31
  %v36 = vsub.f32 %v20, %v8
  %v37 = vsub.f32 %v21, %v9
  %v38 = vsub.f32 %v22, %v10
  %v39 = vsub.f32 %v23, %v11
  %v40 = vmul.f32 %v36, %v36
  %v41 = vmul.f32 %v37, %v37
  %v42 = vmul.f32 %v38, %v38
  %v43 = vmul.f32 %v39, %v39
  %v44 = vadd.f32 %v40, 0.0
  %v45 = vadd.f32 %v41, 0.0
  %v46 = vadd.f32 %v42, 0.0
  %v47 = vadd.f32 %v43, 0.0
  %v48 = vld [vmem:[%s0 + $0x2] sm:$0x1]
  %v49 = vld [vmem:[%s0 + $0x12] sm:$0x1]
  %v50 = vld [vmem:[%s0 + $0x22] sm:$0x1]
  %v51 = vld [vmem:[%s0 + $0x32] sm:$0x1]
  %v52 = vadd.f32 %v24, %v48
  %v53 = vadd.f32 %v25, %v49
  %v54 = vadd.f32 %v26, %v50
  %v55 = vadd.f32 %v27, %v51
  %v56 = vmul.f32 %v48, 0.054545455
  %v57 = vmul.f32 %v49, 0.054545455
  %v58 = vmul.f32 %v50, 0.054545455
  %v59 = vmul.f32 %v51, 0.054545455
  %v60 = vadd.f32 %v32, %v56
  %v61 = vadd.f32 %v33, %v57
  %v62 = vadd.f32 %v34, %v58
  %v63 = vadd.f32 %v35, %v59
  %v64 = vsub.f32 %v48, %v8
  %v65 = vsub.f32 %v49, %v9
  %v66 = vsub.f32 %v50, %v10
  %v67 = vsub.f32 %v51, %v11
  %v68 = vmul.f32 %v64, %v64
  %v69 = vmul.f32 %v65, %v65
  %v70 = vmul.f32 %v66, %v66
  %v71 = vmul.f32 %v67, %v67
  %v72 = vadd.f32 %v44, %v68
  %v73 = vadd.f32 %v45, %v69
  %v74 = vadd.f32 %v46, %v70
  %v75 = vadd.f32 %v47, %v71
  %v76 = vld [vmem:[%s0 + $0x3] sm:$0x1]
  %v77 = vld [vmem:[%s0 + $0x13] sm:$0x1]
  %v78 = vld [vmem:[%s0 + $0x23] sm:$0x1]
  %v79 = vld [vmem:[%s0 + $0x33] sm:$0x1]
  %v80 = vadd.f32 %v52, %v76
  %v81 = vadd.f32 %v53, %v77
  %v82 = vadd.f32 %v54, %v78
  %v83 = vadd.f32 %v55, %v79
  %v84 = vmul.f32 %v76, 0.07272727
  %v85 = vmul.f32 %v77, 0.07272727
  %v86 = vmul.f32 %v78, 0.07272727
  %v87 = vmul.f32 %v79, 0.07272727
  %v88 = vadd.f32 %v60, %v84
  %v89 = vadd.f32 %v61, %v85
  %v90 = vadd.f32 %v62, %v86
  %v91 = vadd.f32 %v63, %v87
  %v92 = vsub.f32 %v76, %v8
  %v93 = vsub.f32 %v77, %v9
  %v94 = vsub.f32 %v78, %v10
  %v95 = vsub.f32 %v79, %v11
  %v96 = vmul.f32 %v92, %v92
  %v97 = vmul.f32 %v93, %v93
  %v98 = vmul.f32 %v94, %v94
  %v99 = vmul.f32 %v95, %v95
  %v100 = vadd.f32 %v72, %v96
  %v101 = vadd.f32 %v73, %v97
  %v102 = vadd.f32 %v74, %v98
  %v103 = vadd.f32 %v75, %v99
  %v104 = vld [vmem:[%s0 + $0x4] sm:$0x1]
  %v105 = vld [vmem:[%s0 + $0x14] sm:$0x1]
  %v106 = vld [vmem:[%s0 + $0x24] sm:$0x1]
  %v107 = vld [vmem:[%s0 + $0x34] sm:$0x1]
  %v108 = vadd.f32 %v80, %v104
  %v109 = vadd.f32 %v81, %v105
  %v110 = vadd.f32 %v82, %v106
  %v111 = vadd.f32 %v83, %v107
  %v112 = vmul.f32 %v104, 0.09090909
  %v113 = vmul.f32 %v105, 0.09090909
  %v114 = vmul.f32 %v106, 0.09090909
  %v115 = vmul.f32 %v107, 0.09090909
  %v116 = vadd.f32 %v88, %v112
  %v117 = vadd.f32 %v89, %v113
  %v118 = vadd.f32 %v90, %v114
  %v119 = vadd.f32 %v91, %v115
  %v120 = vsub.f32 %v104, %v8
  %v121 = vsub.f32 %v105, %v9
  %v122 = vsub.f32 %v106, %v10
  %v123 = vsub.f32 %v107, %v11
  %v124 = vmul.f32 %v120, %v120
  %v125 = vmul.f32 %v121, %v121
  %v126 = vmul.f32 %v122, %v122
  %v127 = vmul.f32 %v123, %v123
  %v128 = vadd.f32 %v100, %v124
  %v129 = vadd.f32 %v101, %v125
  %v130 = vadd.f32 %v102, %v126
  %v131 = vadd.f32 %v103, %v127
  %v132 = vld [vmem:[%s0 + $0x5] sm:$0x1]
  %v133 = vld [vmem:[%s0 + $0x15] sm:$0x1]
  %v134 = vld [vmem:[%s0 + $0x25] sm:$0x1]
  %v135 = vld [vmem:[%s0 + $0x35] sm:$0x1]
  %v136 = vadd.f32 %v108, %v132
  %v137 = vadd.f32 %v109, %v133
  %v138 = vadd.f32 %v110, %v134
  %v139 = vadd.f32 %v111, %v135
  %v140 = vmul.f32 %v132, 0.10909091
  %v141 = vmul.f32 %v133, 0.10909091
  %v142 = vmul.f32 %v134, 0.10909091
  %v143 = vmul.f32 %v135, 0.10909091
  %v144 = vadd.f32 %v116, %v140
  %v145 = vadd.f32 %v117, %v141
  %v146 = vadd.f32 %v118, %v142
  %v147 = vadd.f32 %v119, %v143
  %v148 = vsub.f32 %v132, %v8
  %v149 = vsub.f32 %v133, %v9
  %v150 = vsub.f32 %v134, %v10
  %v151 = vsub.f32 %v135, %v11
  %v152 = vmul.f32 %v148, %v148
  %v153 = vmul.f32 %v149, %v149
  %v154 = vmul.f32 %v150, %v150
  %v155 = vmul.f32 %v151, %v151
  %v156 = vadd.f32 %v128, %v152
  %v157 = vadd.f32 %v129, %v153
  %v158 = vadd.f32 %v130, %v154
  %v159 = vadd.f32 %v131, %v155
  %v160 = vld [vmem:[%s0 + $0x6] sm:$0x1]
  %v161 = vld [vmem:[%s0 + $0x16] sm:$0x1]
  %v162 = vld [vmem:[%s0 + $0x26] sm:$0x1]
  %v163 = vld [vmem:[%s0 + $0x36] sm:$0x1]
  %v164 = vadd.f32 %v136, %v160
  %v165 = vadd.f32 %v137, %v161
  %v166 = vadd.f32 %v138, %v162
  %v167 = vadd.f32 %v139, %v163
  %v168 = vmul.f32 %v160, 0.12727273
  %v169 = vmul.f32 %v161, 0.12727273
  %v170 = vmul.f32 %v162, 0.12727273
  %v171 = vmul.f32 %v163, 0.12727273
  %v172 = vadd.f32 %v144, %v168
  %v173 = vadd.f32 %v145, %v169
  %v174 = vadd.f32 %v146, %v170
  %v175 = vadd.f32 %v147, %v171
  %v176 = vsub.f32 %v160, %v8
  %v177 = vsub.f32 %v161, %v9
  %v178 = vsub.f32 %v162, %v10
  %v179 = vsub.f32 %v163, %v11
  %v180 = vmul.f32 %v176, %v176
  %v181 = vmul.f32 %v177, %v177
  %v182 = vmul.f32 %v178, %v178
  %v183 = vmul.f32 %v179, %v179
  %v184 = vadd.f32 %v156, %v180
  %v185 = vadd.f32 %v157, %v181
  %v186 = vadd.f32 %v158, %v182
  %v187 = vadd.f32 %v159, %v183
  %v188 = vld [vmem:[%s0 + $0x7] sm:$0x1]
  %v189 = vld [vmem:[%s0 + $0x17] sm:$0x1]
  %v190 = vld [vmem:[%s0 + $0x27] sm:$0x1]
  %v191 = vld [vmem:[%s0 + $0x37] sm:$0x1]
  %v192 = vadd.f32 %v164, %v188
  %v193 = vadd.f32 %v165, %v189
  %v194 = vadd.f32 %v166, %v190
  %v195 = vadd.f32 %v167, %v191
  %v196 = vmul.f32 %v188, 0.14545454
  %v197 = vmul.f32 %v189, 0.14545454
  %v198 = vmul.f32 %v190, 0.14545454
  %v199 = vmul.f32 %v191, 0.14545454
  %v200 = vadd.f32 %v172, %v196
  %v201 = vadd.f32 %v173, %v197
  %v202 = vadd.f32 %v174, %v198
  %v203 = vadd.f32 %v175, %v199
  %v204 = vsub.f32 %v188, %v8
  %v205 = vsub.f32 %v189, %v9
  %v206 = vsub.f32 %v190, %v10
  %v207 = vsub.f32 %v191, %v11
  %v208 = vmul.f32 %v204, %v204
  %v209 = vmul.f32 %v205, %v205
  %v210 = vmul.f32 %v206, %v206
  %v211 = vmul.f32 %v207, %v207
  %v212 = vadd.f32 %v184, %v208
  %v213 = vadd.f32 %v185, %v209
  %v214 = vadd.f32 %v186, %v210
  %v215 = vadd.f32 %v187, %v211
  %v216 = vld [vmem:[%s0 + $0x8] sm:$0x1]
  %v217 = vld [vmem:[%s0 + $0x18] sm:$0x1]
  %v218 = vld [vmem:[%s0 + $0x28] sm:$0x1]
  %v219 = vld [vmem:[%s0 + $0x38] sm:$0x1]
  %v220 = vadd.f32 %v192, %v216
  %v221 = vadd.f32 %v193, %v217
  %v222 = vadd.f32 %v194, %v218
  %v223 = vadd.f32 %v195, %v219
  %v224 = vmul.f32 %v216, 0.16363636
  %v225 = vmul.f32 %v217, 0.16363636
  %v226 = vmul.f32 %v218, 0.16363636
  %v227 = vmul.f32 %v219, 0.16363636
  %v228 = vadd.f32 %v200, %v224
  %v229 = vadd.f32 %v201, %v225
  %v230 = vadd.f32 %v202, %v226
  %v231 = vadd.f32 %v203, %v227
  %v232 = vsub.f32 %v216, %v8
  %v233 = vsub.f32 %v217, %v9
  %v234 = vsub.f32 %v218, %v10
  %v235 = vsub.f32 %v219, %v11
  %v236 = vmul.f32 %v232, %v232
  %v237 = vmul.f32 %v233, %v233
  %v238 = vmul.f32 %v234, %v234
  %v239 = vmul.f32 %v235, %v235
  %v240 = vadd.f32 %v212, %v236
  %v241 = vadd.f32 %v213, %v237
  %v242 = vadd.f32 %v214, %v238
  %v243 = vadd.f32 %v215, %v239
  %v244 = vadd.f32 %v220, %v12
  %v245 = vadd.f32 %v221, %v13
  %v246 = vadd.f32 %v222, %v14
  %v247 = vadd.f32 %v223, %v15
  %v248 = vmul.f32 %v12, 0.18181819
  %v249 = vmul.f32 %v13, 0.18181819
  %v250 = vmul.f32 %v14, 0.18181819
  %v251 = vmul.f32 %v15, 0.18181819
  %v252 = vadd.f32 %v228, %v248
  %v253 = vadd.f32 %v229, %v249
  %v254 = vadd.f32 %v230, %v250
  %v255 = vadd.f32 %v231, %v251
  %v256 = vsub.f32 %v12, %v8
  %v257 = vsub.f32 %v13, %v9
  %v258 = vsub.f32 %v14, %v10
  %v259 = vsub.f32 %v15, %v11
  %v260 = vmul.f32 %v256, %v256
  %v261 = vmul.f32 %v257, %v257
  %v262 = vmul.f32 %v258, %v258
  %v263 = vmul.f32 %v259, %v259
  %v264 = vadd.f32 %v240, %v260
  %v265 = vadd.f32 %v241, %v261
  %v266 = vadd.f32 %v242, %v262
  %v267 = vadd.f32 %v243, %v263
  %v268 = vmul.f32 %v244, 0.1
  %v269 = vmul.f32 %v245, 0.1
  %v270 = vmul.f32 %v246, 0.1
  %v271 = vmul.f32 %v247, 0.1
  %v272 = vsub.f32 %v268, %v8
  %v273 = vsub.f32 %v269, %v9
  %v274 = vsub.f32 %v270, %v10
  %v275 = vsub.f32 %v271, %v11
  %v276 = vmul.f32 %v272, 10.0
  %v277 = vmul.f32 %v273, 10.0
  %v278 = vmul.f32 %v274, 10.0
  %v279 = vmul.f32 %v275, 10.0
  %v280 = vmul.f32 %v276, %v272
  %v281 = vmul.f32 %v277, %v273
  %v282 = vmul.f32 %v278, %v274
  %v283 = vmul.f32 %v279, %v275
  %v284 = vsub.f32 %v264, %v280
  %v285 = vsub.f32 %v265, %v281
  %v286 = vsub.f32 %v266, %v282
  %v287 = vsub.f32 %v267, %v283
  %v288 = vmul.f32 %v284, 0.11111111
  %v289 = vmul.f32 %v285, 0.11111111
  %v290 = vmul.f32 %v286, 0.11111111
  %v291 = vmul.f32 %v287, 0.11111111
  %v292 = vrsqrt.pop %v288
  %v293 = vrsqrt.pop %v289
  %v294 = vrsqrt.pop %v290
  %v295 = vrsqrt.pop %v291
  %v296 = vmul.f32 %v288, %v292
  %v297 = vmul.f32 %v289, %v293
  %v298 = vmul.f32 %v290, %v294
  %v299 = vmul.f32 %v291, %v295
  %v304 = vrot.slane %v297, 7
  %vm305 = vcmask 1041409
  %v306 = vsel %vm305, %v304, %v296
  %v307 = vrot.slane %v298, 6
  %vm308 = vcmask 1042434
  %v309 = vsel %vm308, %v307, %v306
  %v310 = vrot.slane %v299, 5
  %vm311 = vcmask 1043459
  %v312 = vsel %vm311, %v310, %v309
  %vm314 = vcmask 44032
  %315 = vst.msk [vmem:[%s1 + $0xc] sm:$0xf] %vm314, %v312
  %v316 = vmul.f32 %v268, %v292
  %v317 = vmul.f32 %v269, %v293
  %v318 = vmul.f32 %v270, %v294
  %v319 = vmul.f32 %v271, %v295
  %v324 = vrot.slane %v317, 7
  %v325 = vsel %vm305, %v324, %v316
  %v326 = vrot.slane %v318, 6
  %v327 = vsel %vm308, %v326, %v325
  %v328 = vrot.slane %v319, 5
  %v329 = vsel %vm311, %v328, %v327
  %331 = vst.msk [vmem:[%s1 + $0x10] sm:$0xf] %vm314, %v329
  %v332 = vrcp.pop %v8
  %v333 = vrcp.pop %v9
  %v334 = vrcp.pop %v10
  %v335 = vrcp.pop %v11
  %v336 = vmul.f32 %v12, %v332
  %v337 = vmul.f32 %v13, %v333
  %v338 = vmul.f32 %v14, %v334
  %v339 = vmul.f32 %v15, %v335
  %v340 = vsub.f32 %v336, 1.0
  %v341 = vsub.f32 %v337, 1.0
  %v342 = vsub.f32 %v338, 1.0
  %v343 = vsub.f32 %v339, 1.0
  %v348 = vrot.slane %v341, 7
  %v349 = vsel %vm305, %v348, %v340
  %v350 = vrot.slane %v342, 6
  %v351 = vsel %vm308, %v350, %v349
  %v352 = vrot.slane %v343, 5
  %v353 = vsel %vm311, %v352, %v351
  %355 = vst.msk [vmem:[%s1 + $0x14] sm:$0xf] %vm314, %v353
  %v360 = vrot.slane %v253, 7
  %v361 = vsel %vm305, %v360, %v252
  %v362 = vrot.slane %v254, 6
  %v363 = vsel %vm308, %v362, %v361
  %v364 = vrot.slane %v255, 5
  %v365 = vsel %vm311, %v364, %v363
  %367 = vst.msk [vmem:[%s1 + $0x18] sm:$0xf] %vm314, %v365
  %v372 = vrot.slane %v269, 7
  %v373 = vsel %vm305, %v372, %v268
  %v374 = vrot.slane %v270, 6
  %v375 = vsel %vm308, %v374, %v373
  %v376 = vrot.slane %v271, 5
  %v377 = vsel %vm311, %v376, %v375
  %379 = vst.msk [vmem:[%s1 + $0x1c] sm:$0xf] %vm314, %v377
  %v384 = vrot.slane %v13, 7
  %v385 = vsel %vm305, %v384, %v12
  %v386 = vrot.slane %v14, 6
  %v387 = vsel %vm308, %v386, %v385
  %v388 = vrot.slane %v15, 5
  %v389 = vsel %vm311, %v388, %v387
  %391 = vst.msk [vmem:[%s1 + $0x20] sm:$0xf] %vm314, %v389
  %v392 = vlaneseq
  %v393 = vshrl.u32 %v392, 7
  %v394 = vsub.s32 0, %v393
  %v395 = vrot.slane %v36, %v394
  %v396 = vmul.f32 %v37, %v395
  %v397 = vmul.f32 %v38, %v395
  %v398 = vmul.f32 %v39, %v395
  %v399 = vlaneseq
  %v400 = vshrl.u32 %v399, 7
  %v401 = vsub.s32 0, %v400
  %v402 = vrot.slane %v64, %v401
  %v403 = vmul.f32 %v65, %v402
  %v404 = vmul.f32 %v66, %v402
  %v405 = vmul.f32 %v67, %v402
  %v406 = vadd.f32 %v396, %v403
  %v407 = vadd.f32 %v397, %v404
  %v408 = vadd.f32 %v398, %v405
  %v409 = vlaneseq
  %v410 = vshrl.u32 %v409, 7
  %v411 = vsub.s32 0, %v410
  %v412 = vrot.slane %v92, %v411
  %v413 = vmul.f32 %v93, %v412
  %v414 = vmul.f32 %v94, %v412
  %v415 = vmul.f32 %v95, %v412
  %v416 = vadd.f32 %v406, %v413
  %v417 = vadd.f32 %v407, %v414
  %v418 = vadd.f32 %v408, %v415
  %v419 = vlaneseq
  %v420 = vshrl.u32 %v419, 7
  %v421 = vsub.s32 0, %v420
  %v422 = vrot.slane %v120, %v421
  %v423 = vmul.f32 %v121, %v422
  %v424 = vmul.f32 %v122, %v422
  %v425 = vmul.f32 %v123, %v422
  %v426 = vadd.f32 %v416, %v423
  %v427 = vadd.f32 %v417, %v424
  %v428 = vadd.f32 %v418, %v425
  %v429 = vlaneseq
  %v430 = vshrl.u32 %v429, 7
  %v431 = vsub.s32 0, %v430
  %v432 = vrot.slane %v148, %v431
  %v433 = vmul.f32 %v149, %v432
  %v434 = vmul.f32 %v150, %v432
  %v435 = vmul.f32 %v151, %v432
  %v436 = vadd.f32 %v426, %v433
  %v437 = vadd.f32 %v427, %v434
  %v438 = vadd.f32 %v428, %v435
  %v439 = vlaneseq
  %v440 = vshrl.u32 %v439, 7
  %v441 = vsub.s32 0, %v440
  %v442 = vrot.slane %v176, %v441
  %v443 = vmul.f32 %v177, %v442
  %v444 = vmul.f32 %v178, %v442
  %v445 = vmul.f32 %v179, %v442
  %v446 = vadd.f32 %v436, %v443
  %v447 = vadd.f32 %v437, %v444
  %v448 = vadd.f32 %v438, %v445
  %v449 = vlaneseq
  %v450 = vshrl.u32 %v449, 7
  %v451 = vsub.s32 0, %v450
  %v452 = vrot.slane %v204, %v451
  %v453 = vmul.f32 %v205, %v452
  %v454 = vmul.f32 %v206, %v452
  %v455 = vmul.f32 %v207, %v452
  %v456 = vadd.f32 %v446, %v453
  %v457 = vadd.f32 %v447, %v454
  %v458 = vadd.f32 %v448, %v455
  %v459 = vlaneseq
  %v460 = vshrl.u32 %v459, 7
  %v461 = vsub.s32 0, %v460
  %v462 = vrot.slane %v232, %v461
  %v463 = vmul.f32 %v233, %v462
  %v464 = vmul.f32 %v234, %v462
  %v465 = vmul.f32 %v235, %v462
  %v466 = vadd.f32 %v456, %v463
  %v467 = vadd.f32 %v457, %v464
  %v468 = vadd.f32 %v458, %v465
  %v469 = vlaneseq
  %v470 = vshrl.u32 %v469, 7
  %v471 = vsub.s32 0, %v470
  %v472 = vrot.slane %v256, %v471
  %v473 = vmul.f32 %v257, %v472
  %v474 = vmul.f32 %v258, %v472
  %v475 = vmul.f32 %v259, %v472
  %v476 = vadd.f32 %v466, %v473
  %v477 = vadd.f32 %v467, %v474
  %v478 = vadd.f32 %v468, %v475
  %v479 = vlaneseq
  %v480 = vshrl.u32 %v479, 7
  %v481 = vsub.s32 0, %v480
  %v482 = vrot.slane %v272, %v481
  %v483 = vmul.f32 %v277, %v482
  %v484 = vmul.f32 %v278, %v482
  %v485 = vmul.f32 %v279, %v482
  %v486 = vsub.f32 %v476, %v483
  %v487 = vsub.f32 %v477, %v484
  %v488 = vsub.f32 %v478, %v485
  %v489 = vmul.f32 %v486, 0.11111111
  %v490 = vmul.f32 %v487, 0.11111111
  %v491 = vmul.f32 %v488, 0.11111111
  %v492 = vlaneseq
  %v493 = vshrl.u32 %v492, 7
  %v494 = vsub.s32 0, %v493
  %v495 = vrot.slane %v292, %v494
  %v496 = vmul.f32 %v293, %v495
  %v497 = vmul.f32 %v294, %v495
  %v498 = vmul.f32 %v295, %v495
  %v499 = vmul.f32 %v489, %v496
  %v500 = vmul.f32 %v490, %v497
  %v501 = vmul.f32 %v491, %v498
  %v505 = vrot.slane %v500, 7
  %v506 = vsel %vm305, %v505, %v499
  %v507 = vrot.slane %v501, 6
  %v508 = vsel %vm308, %v507, %v506
  %vm510 = vcmask 43008
  %511 = vst.msk [vmem:[%s1] sm:$0x7] %vm510, %v508
  %v515 = vrot.slane %v490, 7
  %v516 = vsel %vm305, %v515, %v489
  %v517 = vrot.slane %v491, 6
  %v518 = vsel %vm308, %v517, %v516
  %520 = vst.msk [vmem:[%s1 + $0x6] sm:$0x7] %vm510, %v518
  %v521 = vlaneseq
  %v522 = vshrl.u32 %v521, 7
  %v523 = vsub.s32 0, %v522
  %v524 = vrot.slane %v37, %v523
  %v525 = vmul.f32 %v38, %v524
  %v526 = vmul.f32 %v39, %v524
  %v527 = vlaneseq
  %v528 = vshrl.u32 %v527, 7
  %v529 = vsub.s32 0, %v528
  %v530 = vrot.slane %v65, %v529
  %v531 = vmul.f32 %v66, %v530
  %v532 = vmul.f32 %v67, %v530
  %v533 = vadd.f32 %v525, %v531
  %v534 = vadd.f32 %v526, %v532
  %v535 = vlaneseq
  %v536 = vshrl.u32 %v535, 7
  %v537 = vsub.s32 0, %v536
  %v538 = vrot.slane %v93, %v537
  %v539 = vmul.f32 %v94, %v538
  %v540 = vmul.f32 %v95, %v538
  %v541 = vadd.f32 %v533, %v539
  %v542 = vadd.f32 %v534, %v540
  %v543 = vlaneseq
  %v544 = vshrl.u32 %v543, 7
  %v545 = vsub.s32 0, %v544
  %v546 = vrot.slane %v121, %v545
  %v547 = vmul.f32 %v122, %v546
  %v548 = vmul.f32 %v123, %v546
  %v549 = vadd.f32 %v541, %v547
  %v550 = vadd.f32 %v542, %v548
  %v551 = vlaneseq
  %v552 = vshrl.u32 %v551, 7
  %v553 = vsub.s32 0, %v552
  %v554 = vrot.slane %v149, %v553
  %v555 = vmul.f32 %v150, %v554
  %v556 = vmul.f32 %v151, %v554
  %v557 = vadd.f32 %v549, %v555
  %v558 = vadd.f32 %v550, %v556
  %v559 = vlaneseq
  %v560 = vshrl.u32 %v559, 7
  %v561 = vsub.s32 0, %v560
  %v562 = vrot.slane %v177, %v561
  %v563 = vmul.f32 %v178, %v562
  %v564 = vmul.f32 %v179, %v562
  %v565 = vadd.f32 %v557, %v563
  %v566 = vadd.f32 %v558, %v564
  %v567 = vlaneseq
  %v568 = vshrl.u32 %v567, 7
  %v569 = vsub.s32 0, %v568
  %v570 = vrot.slane %v205, %v569
  %v571 = vmul.f32 %v206, %v570
  %v572 = vmul.f32 %v207, %v570
  %v573 = vadd.f32 %v565, %v571
  %v574 = vadd.f32 %v566, %v572
  %v575 = vlaneseq
  %v576 = vshrl.u32 %v575, 7
  %v577 = vsub.s32 0, %v576
  %v578 = vrot.slane %v233, %v577
  %v579 = vmul.f32 %v234, %v578
  %v580 = vmul.f32 %v235, %v578
  %v581 = vadd.f32 %v573, %v579
  %v582 = vadd.f32 %v574, %v580
  %v583 = vlaneseq
  %v584 = vshrl.u32 %v583, 7
  %v585 = vsub.s32 0, %v584
  %v586 = vrot.slane %v257, %v585
  %v587 = vmul.f32 %v258, %v586
  %v588 = vmul.f32 %v259, %v586
  %v589 = vadd.f32 %v581, %v587
  %v590 = vadd.f32 %v582, %v588
  %v591 = vlaneseq
  %v592 = vshrl.u32 %v591, 7
  %v593 = vsub.s32 0, %v592
  %v594 = vrot.slane %v273, %v593
  %v595 = vmul.f32 %v278, %v594
  %v596 = vmul.f32 %v279, %v594
  %v597 = vsub.f32 %v589, %v595
  %v598 = vsub.f32 %v590, %v596
  %v599 = vmul.f32 %v597, 0.11111111
  %v600 = vmul.f32 %v598, 0.11111111
  %v601 = vlaneseq
  %v602 = vshrl.u32 %v601, 7
  %v603 = vsub.s32 0, %v602
  %v604 = vrot.slane %v293, %v603
  %v605 = vmul.f32 %v294, %v604
  %v606 = vmul.f32 %v295, %v604
  %v607 = vmul.f32 %v599, %v605
  %v608 = vmul.f32 %v600, %v606
  %v611 = vrot.slane %v608, 7
  %v612 = vsel %vm305, %v611, %v607
  %vm614 = vcmask 41984
  %615 = vst.msk [vmem:[%s1 + $0x3] sm:$0x3] %vm614, %v612
  %v618 = vrot.slane %v600, 7
  %v619 = vsel %vm305, %v618, %v599
  %621 = vst.msk [vmem:[%s1 + $0x9] sm:$0x3] %vm614, %v619
  %v622 = vlaneseq
  %v623 = vshrl.u32 %v622, 7
  %v624 = vsub.s32 0, %v623
  %v625 = vrot.slane %v38, %v624
  %v626 = vmul.f32 %v39, %v625
  %v627 = vlaneseq
  %v628 = vshrl.u32 %v627, 7
  %v629 = vsub.s32 0, %v628
  %v630 = vrot.slane %v66, %v629
  %v631 = vmul.f32 %v67, %v630
  %v632 = vadd.f32 %v626, %v631
  %v633 = vlaneseq
  %v634 = vshrl.u32 %v633, 7
  %v635 = vsub.s32 0, %v634
  %v636 = vrot.slane %v94, %v635
  %v637 = vmul.f32 %v95, %v636
  %v638 = vadd.f32 %v632, %v637
  %v639 = vlaneseq
  %v640 = vshrl.u32 %v639, 7
  %v641 = vsub.s32 0, %v640
  %v642 = vrot.slane %v122, %v641
  %v643 = vmul.f32 %v123, %v642
  %v644 = vadd.f32 %v638, %v643
  %v645 = vlaneseq
  %v646 = vshrl.u32 %v645, 7
  %v647 = vsub.s32 0, %v646
  %v648 = vrot.slane %v150, %v647
  %v649 = vmul.f32 %v151, %v648
  %v650 = vadd.f32 %v644, %v649
  %v651 = vlaneseq
  %v652 = vshrl.u32 %v651, 7
  %v653 = vsub.s32 0, %v652
  %v654 = vrot.slane %v178, %v653
  %v655 = vmul.f32 %v179, %v654
  %v656 = vadd.f32 %v650, %v655
  %v657 = vlaneseq
  %v658 = vshrl.u32 %v657, 7
  %v659 = vsub.s32 0, %v658
  %v660 = vrot.slane %v206, %v659
  %v661 = vmul.f32 %v207, %v660
  %v662 = vadd.f32 %v656, %v661
  %v663 = vlaneseq
  %v664 = vshrl.u32 %v663, 7
  %v665 = vsub.s32 0, %v664
  %v666 = vrot.slane %v234, %v665
  %v667 = vmul.f32 %v235, %v666
  %v668 = vadd.f32 %v662, %v667
  %v669 = vlaneseq
  %v670 = vshrl.u32 %v669, 7
  %v671 = vsub.s32 0, %v670
  %v672 = vrot.slane %v258, %v671
  %v673 = vmul.f32 %v259, %v672
  %v674 = vadd.f32 %v668, %v673
  %v675 = vlaneseq
  %v676 = vshrl.u32 %v675, 7
  %v677 = vsub.s32 0, %v676
  %v678 = vrot.slane %v274, %v677
  %v679 = vmul.f32 %v279, %v678
  %v680 = vsub.f32 %v674, %v679
  %v681 = vmul.f32 %v680, 0.11111111
  %v682 = vlaneseq
  %v683 = vshrl.u32 %v682, 7
  %v684 = vsub.s32 0, %v683
  %v685 = vrot.slane %v294, %v684
  %v686 = vmul.f32 %v295, %v685
  %v687 = vmul.f32 %v681, %v686
  %vm688 = vcmask 40960
  %689 = vst.msk [vmem:[%s1 + $0x5] sm:$0x1] %vm688, %v687
  %690 = vst.msk [vmem:[%s1 + $0xb] sm:$0x1] %vm688, %v681
  // Predicated region
  $region6: #{factor_extraction.1} parent=0 // pred_check
    _
  $region7: #{factor_extraction.1} parent=0 // pred_check_branch
    %692 = sbr.rel (0) target = $region9
  $region8: #{factor_extraction.1} parent=0 // pred_region
    _
  $region9: #{factor_extraction.1} parent=0 // pred_fallthru
    _
  // Predicated region
  $region10: #{factor_extraction.1} parent=0 // pred_check
    _
  $region11: #{factor_extraction.1} parent=0 // pred_check_branch
    %694 = sbr.rel (0) target = $region13
  $region12: #{factor_extraction.1} parent=0 // pred_region
    _
  $region13: #{factor_extraction.1} parent=0 // pred_fallthru
    _

</llo_original>
